<compile_context>
chip_gen: v7x
topology: tpu7x:2x2x1
jax: 0.10.0
libtpu: 0.0.40
codegen_flags: <defaults>
</compile_context>

<pallas_src>
import functools

import jax
import jax.numpy as jnp
from jax import lax
from jax.experimental import pallas as pl
from jax.experimental.pallas import tpu as pltpu

_LANE = 128


def _round_up(x, m):
    return (x + m - 1) // m * m


def _tpu_vmem_capacity():
    try:
        return int(pltpu.get_tpu_info().vmem_capacity_bytes)
    except Exception:
        return 64 * 1024 * 1024  # conservative (v7x per-core VMEM)


def _vmem_limit_bytes(cap):
    # ~48 MiB on a 64 MiB part (v7x), ~96 MiB on a 128 MiB part (v5e/v6e).
    return max(32 * 1024 * 1024, min(cap * 3 // 4, cap - 16 * 1024 * 1024))


# ---------------------------------------------------------------------------
# Fused single-block kernel (small / mid problems: everything VMEM-resident)
# ---------------------------------------------------------------------------
def _fused_kernel(x_ref, w1t_ref, w2t_ref, g1_ref, b1_ref, g2_ref, b2_ref,
                  o_ref, *, bn, s, p_rows, eps):
    inv_p = 1.0 / float(p_rows)

    # conv1 (1x1, no bias) == matmul on the MXU; bf16 in, f32 accumulate.
    h = jnp.dot(x_ref[...].astype(jnp.bfloat16), w1t_ref[...],
                preferred_element_type=jnp.float32)                 # (P, Op)

    # BN1: one-pass batch stats, affine folded into scale/shift.
    m1 = jnp.sum(h, axis=0, keepdims=True) * inv_p
    v1 = jnp.maximum(jnp.sum(h * h, axis=0, keepdims=True) * inv_p - m1 * m1,
                     0.0)
    scale1 = g1_ref[...] * lax.rsqrt(v1 + eps)
    shift1 = b1_ref[...] - m1 * scale1
    a = jnp.maximum(h * scale1 + shift1, 0.0)                        # BN1+ReLU

    # conv2 (1x1) + BN2 + ReLU.
    h2 = jnp.dot(a.astype(jnp.bfloat16), w2t_ref[...],
                 preferred_element_type=jnp.float32)                 # (P, Op)
    m2 = jnp.sum(h2, axis=0, keepdims=True) * inv_p
    v2 = jnp.maximum(jnp.sum(h2 * h2, axis=0, keepdims=True) * inv_p - m2 * m2,
                     0.0)
    scale2 = g2_ref[...] * lax.rsqrt(v2 + eps)
    shift2 = b2_ref[...] - m2 * scale2
    y = jnp.maximum(h2 * scale2 + shift2, 0.0)

    # adaptive_max_pool1d(., 1): max over the spatial axis within each sample.
    o_ref[...] = jnp.max(y.reshape(bn, s, y.shape[-1]), axis=1)


def _local_op_fused(x_flat, w1t, w2t, g1, b1, g2, b2, *, bn, s, eps,
                    vmem_limit):
    p_rows = x_flat.shape[0]
    o_pad = w1t.shape[1]
    kernel = functools.partial(_fused_kernel, bn=bn, s=s, p_rows=p_rows,
                               eps=eps)
    vmem = pl.BlockSpec(memory_space=pltpu.MemorySpace.VMEM)
    return pl.pallas_call(
        kernel,
        out_shape=jax.ShapeDtypeStruct((bn, o_pad), jnp.float32),
        in_specs=[vmem] * 7,
        out_specs=vmem,
        compiler_params=pltpu.CompilerParams(vmem_limit_bytes=vmem_limit),
    )(x_flat, w1t, w2t, g1, b1, g2, b2)


# ---------------------------------------------------------------------------
# 2-pass row-tiled pipeline (large problems) — no large HBM intermediates
# ---------------------------------------------------------------------------
def _partial_stats(v):
    s1 = jnp.sum(v, axis=0, keepdims=True)
    s2 = jnp.sum(v * v, axis=0, keepdims=True)
    return jnp.concatenate([s1, s2], axis=0).reshape(1, 2, -1)


def _masked_stats(v, valid_last):
    row = lax.broadcasted_iota(jnp.int32, v.shape, 0)
    return _partial_stats(jnp.where(row < valid_last, v, 0.0))


def _pass1_kernel(x_ref, w1t_ref, st_ref, *, valid_last):
    # conv1; emit per-tile partial BN1 statistics only (no h writeback).
    h = jnp.dot(x_ref[...].astype(jnp.bfloat16), w1t_ref[...],
                preferred_element_type=jnp.float32)
    if valid_last is None:
        st_ref[...] = _partial_stats(h)
    else:
        is_last = pl.program_id(0) == pl.num_programs(0) - 1

        @pl.when(jnp.logical_not(is_last))
        def _():
            st_ref[...] = _partial_stats(h)

        @pl.when(is_last)
        def _():
            st_ref[...] = _masked_stats(h, valid_last)


def _pass2_kernel(x_ref, w1t_ref, scale1_ref, shift1_ref, w2t_ref,
                  st_ref, mx_ref, mn_ref, *, spt, s, valid_last):
    # Recompute conv1 (cheaper than re-reading an HBM h), BN1-apply + ReLU,
    # conv2, per-tile partial BN2 stats, and per-sample max/min of pre-BN2 h2.
    h = jnp.dot(x_ref[...].astype(jnp.bfloat16), w1t_ref[...],
                preferred_element_type=jnp.float32)
    a = jnp.maximum(h * scale1_ref[...] + shift1_ref[...], 0.0)
    h2 = jnp.dot(a.astype(jnp.bfloat16), w2t_ref[...],
                 preferred_element_type=jnp.float32)

    # Spatial max pooled past BN2: BN2 is a per-channel affine + ReLU, which
    # commutes with max (scale>=0) / min (scale<0).  Emit both; JAX selects.
    h2r = h2.reshape(spt, s, h2.shape[-1])
    mx_ref[...] = jnp.max(h2r, axis=1)
    mn_ref[...] = jnp.min(h2r, axis=1)

    if valid_last is None:
        st_ref[...] = _partial_stats(h2)
    else:
        is_last = pl.program_id(0) == pl.num_programs(0) - 1

        @pl.when(jnp.logical_not(is_last))
        def _():
            st_ref[...] = _partial_stats(h2)

        @pl.when(is_last)
        def _():
            st_ref[...] = _masked_stats(h2, valid_last)


def _fold_bn(partial_stats, gamma, beta, n_rows, eps):
    """Combine per-tile (sum, sumsq) into folded per-channel scale/shift."""
    s1 = jnp.sum(partial_stats[:, 0, :], axis=0)
    s2 = jnp.sum(partial_stats[:, 1, :], axis=0)
    mean = s1 / n_rows
    var = jnp.maximum(s2 / n_rows - mean * mean, 0.0)
    scale = gamma[0] * lax.rsqrt(var + eps)
    shift = beta[0] - mean * scale
    o_pad = scale.shape[0]
    return scale.reshape(1, o_pad), shift.reshape(1, o_pad)


def _local_op_gridded(x_flat, w1t, w2t, g1, b1, g2, b2, *, bn, s, eps,
                      target_rows, vmem_limit):
    p_rows = bn * s
    d = x_flat.shape[1]
    o_pad = w1t.shape[1]

    # Samples per tile: multiple of 8 (sublane layout); tiles own whole samples
    # so the max-pool never crosses a tile boundary.  Keep >= 2 tiles when
    # possible so the "parallel" grid axis can use both TCs on v7x.
    spt = max(8, (target_rows // max(s, 1)) // 8 * 8)
    if bn > 8:
        spt = min(spt, _round_up((bn + 1) // 2, 8))
    spt = min(spt, _round_up(bn, 8))
    bn_pad = _round_up(bn, spt)
    tile_rows = spt * s
    num_tiles = bn_pad // spt
    valid_last = None
    if bn_pad != bn:
        # Rows of the last tile that are real data; the rest are garbage rows
        # (read past the end of x) and must be excluded from the statistics.
        valid_last = p_rows - (num_tiles - 1) * tile_rows

    cparams = pltpu.CompilerParams(dimension_semantics=("parallel",),
                                   vmem_limit_bytes=vmem_limit)
    grid = (num_tiles,)

    x_spec = pl.BlockSpec((tile_rows, d), lambda i: (i, 0))
    w1_spec = pl.BlockSpec((d, o_pad), lambda i: (0, 0))
    w2_spec = pl.BlockSpec((o_pad, o_pad), lambda i: (0, 0))
    chan_spec = pl.BlockSpec((1, o_pad), lambda i: (0, 0))
    stat_spec = pl.BlockSpec((1, 2, o_pad), lambda i: (i, 0, 0))
    pool_spec = pl.BlockSpec((spt, o_pad), lambda i: (i, 0))

    # ---- pass 1: conv1 -> per-tile partial BN1 stats (stats only) ----------
    stats1 = pl.pallas_call(
        functools.partial(_pass1_kernel, valid_last=valid_last),
        grid=grid,
        in_specs=[x_spec, w1_spec],
        out_specs=stat_spec,
        out_shape=jax.ShapeDtypeStruct((num_tiles, 2, o_pad), jnp.float32),
        compiler_params=cparams,
    )(x_flat, w1t)

    scale1, shift1 = _fold_bn(stats1, g1, b1, p_rows, eps)

    # ---- pass 2: recompute conv1, BN1+ReLU, conv2, partial BN2 stats,
    #              per-sample pre-BN2 max/min (pool folded past BN2) ----------
    stats2, hmax, hmin = pl.pallas_call(
        functools.partial(_pass2_kernel, spt=spt, s=s, valid_last=valid_last),
        grid=grid,
        in_specs=[x_spec, w1_spec, chan_spec, chan_spec, w2_spec],
        out_specs=[stat_spec, pool_spec, pool_spec],
        out_shape=[jax.ShapeDtypeStruct((num_tiles, 2, o_pad), jnp.float32),
                   jax.ShapeDtypeStruct((bn_pad, o_pad), jnp.float32),
                   jax.ShapeDtypeStruct((bn_pad, o_pad), jnp.float32)],
        compiler_params=cparams,
    )(x_flat, w1t, scale1, shift1, w2t)

    scale2, shift2 = _fold_bn(stats2, g2, b2, p_rows, eps)

    # BN2 affine + ReLU commute with the spatial max: per channel pick max
    # (scale2>=0) or min (scale2<0) of h2, then apply the affine + ReLU once.
    pooled_pre = jnp.where(scale2 >= 0.0, hmax[:bn], hmin[:bn])
    return jnp.maximum(pooled_pre * scale2 + shift2, 0.0)


# ---------------------------------------------------------------------------
# Public wrapper
# ---------------------------------------------------------------------------
def local_op(x, w1, w2, gamma1, beta1, gamma2, beta2, eps=1e-5,
             fused_row_limit=None, target_rows=None):
    """x: (b, n, s, d) float32.  Returns (b, out_channels, n) float32."""
    b, n, s, d = x.shape
    o = w1.shape[0]
    bn = b * n
    p_rows = bn * s
    o_pad = _round_up(o, _LANE)

    cap = _tpu_vmem_capacity()
    vmem_limit = _vmem_limit_bytes(cap)
    if target_rows is None:
        # Bigger blocks on 128-MiB-VMEM parts (v5e/v6e); moderate on v7x.
        target_rows = 3072 if cap >= (100 << 20) else 1536
    if fused_row_limit is None:
        # Rough fused-kernel footprint: x f32 + ~4 f32 temporaries of width o_pad.
        per_row = 4 * d + 16 * o_pad
        fused_row_limit = min(32768, (vmem_limit // 2) // per_row)

    # torch: x.permute(0,1,3,2).reshape(-1, d, s); a 1x1 Conv1d on that NCW
    # tensor is exactly (rows, d) @ (d, o) with rows = (bi*n+ni)*s + si.
    # Streamed directly (no padded copy); bf16 cast happens inside the kernels.
    x_flat = x.reshape(p_rows, d).astype(jnp.float32)

    # Zero-padded, lane-aligned (128) weights / BN params; bf16 matmul operands.
    # Pad gamma/beta = 0 so pad output channels stay exactly zero.
    w1t = (jnp.zeros((d, o_pad), jnp.float32)
           .at[:, :o].set(w1.T.astype(jnp.float32)).astype(jnp.bfloat16))
    w2t = (jnp.zeros((o_pad, o_pad), jnp.float32)
           .at[:o, :o].set(w2.T.astype(jnp.float32)).astype(jnp.bfloat16))
    g1 = jnp.zeros((1, o_pad), jnp.float32).at[0, :o].set(gamma1.astype(jnp.float32))
    b1 = jnp.zeros((1, o_pad), jnp.float32).at[0, :o].set(beta1.astype(jnp.float32))
    g2 = jnp.zeros((1, o_pad), jnp.float32).at[0, :o].set(gamma2.astype(jnp.float32))
    b2 = jnp.zeros((1, o_pad), jnp.float32).at[0, :o].set(beta2.astype(jnp.float32))

    if p_rows <= fused_row_limit:
        pooled = _local_op_fused(x_flat, w1t, w2t, g1, b1, g2, b2,
                                 bn=bn, s=s, eps=eps, vmem_limit=vmem_limit)
    else:
        pooled = _local_op_gridded(x_flat, w1t, w2t, g1, b1, g2, b2,
                                   bn=bn, s=s, eps=eps,
                                   target_rows=target_rows,
                                   vmem_limit=vmem_limit)

    pooled = pooled[:bn, :o]
    # (b*n, O) -> (b, n, O) -> (b, O, n)   (matches torch permute(0, 2, 1))
    return pooled.reshape(b, n, o).transpose(0, 2, 1)


# ---------------------------------------------------------------------------
# Pure-JAX reference (f32 end-to-end) for a sanity check
# ---------------------------------------------------------------------------
def local_op_ref(x, w1, w2, gamma1, beta1, gamma2, beta2, eps=1e-5):
    b, n, s, d = x.shape
    o = w1.shape[0]
    h = x.reshape(b * n * s, d) @ w1.T
    m = h.mean(0)
    v = ((h - m) ** 2).mean(0)
    h = jnp.maximum((h - m) / jnp.sqrt(v + eps) * gamma1 + beta1, 0.0)
    h2 = h @ w2.T
    m2 = h2.mean(0)
    v2 = ((h2 - m2) ** 2).mean(0)
    h2 = jnp.maximum((h2 - m2) / jnp.sqrt(v2 + eps) * gamma2 + beta2, 0.0)
    pooled = jnp.max(h2.reshape(b * n, s, o), axis=1)
    return pooled.reshape(b, n, o).transpose(0, 2, 1)


if __name__ == "__main__":
    key = jax.random.PRNGKey(0)

    def make_params(k, d, o):
        k1, k2 = jax.random.split(k)
        w1 = jax.random.normal(k1, (o, d), jnp.float32) / jnp.sqrt(float(d))
        w2 = jax.random.normal(k2, (o, o), jnp.float32) / jnp.sqrt(float(o))
        ar = jnp.arange(o, dtype=jnp.float32)
        g1 = 1.0 + 0.1 * jnp.sin(ar)
        b1 = 0.05 * jnp.cos(ar)
        # Mixed-sign gamma2 to exercise the max/min selection of the folded pool.
        g2 = (1.0 - 0.1 * jnp.cos(ar)) * jnp.where(ar % 2 == 0, 1.0, -1.0)
        b2 = 0.05 * jnp.sin(ar)
        return w1, w2, g1, b1, g2, b2

    def check(out, ref):
        assert out.dtype == jnp.float32
        assert jnp.allclose(out, ref, atol=1e-1, rtol=1e-1), \
            float(jnp.max(jnp.abs(out - ref)))

    # --- small case: fused single-block path -------------------------------
    b, n, s, d, o = 2, 8, 16, 32, 64
    kx, kp, key = jax.random.split(key, 3)
    x = jax.random.normal(kx, (b, n, s, d), dtype=jnp.float32)
    params = make_params(kp, d, o)
    out = jax.block_until_ready(local_op(x, *params))
    assert out.shape == (b, o, n), out.shape
    check(out, local_op_ref(x, *params))

    # --- ragged case: force the 2-pass pipeline with a partial last tile ----
    b, n, s, d, o = 3, 10, 20, 48, 96
    kx, kp, key = jax.random.split(key, 3)
    x = jax.random.normal(kx, (b, n, s, d), dtype=jnp.float32)
    params = make_params(kp, d, o)
    out = jax.block_until_ready(
        local_op(x, *params, fused_row_limit=0, target_rows=160))
    assert out.shape == (b, o, n), out.shape
    check(out, local_op_ref(x, *params))

    # --- evenly tiled case: 2-pass pipeline, no masking, >= 2 tiles ----------
    b, n, s, d, o = 4, 8, 32, 64, 128
    kx, kp, key = jax.random.split(key, 3)
    x = jax.random.normal(kx, (b, n, s, d), dtype=jnp.float32)
    params = make_params(kp, d, o)
    out = jax.block_until_ready(local_op(x, *params, fused_row_limit=0))
    assert out.shape == (b, o, n), out.shape
    check(out, local_op_ref(x, *params))

    print("KERNEL_OK")
</pallas_src>

<mosaic_0001>
module attributes {stable_mosaic.version = 11 : i64} {
  func.func @_fused_kernel(%arg0: memref<256x32xf32, #tpu.memory_space<vmem>>, %arg1: memref<32x128xbf16, #tpu.memory_space<vmem>>, %arg2: memref<128x128xbf16, #tpu.memory_space<vmem>>, %arg3: memref<1x128xf32, #tpu.memory_space<vmem>>, %arg4: memref<1x128xf32, #tpu.memory_space<vmem>>, %arg5: memref<1x128xf32, #tpu.memory_space<vmem>>, %arg6: memref<1x128xf32, #tpu.memory_space<vmem>>, %arg7: memref<16x128xf32, #tpu.memory_space<vmem>>) attributes {dimension_semantics = [], scalar_prefetch = 0 : i64, scratch_operands = 0 : i64, tpu.core_type = #tpu.core_type<tc>} {
    %c0 = arith.constant 0 : index
    %c0_0 = arith.constant 0 : index
    %0 = vector.load %arg0[%c0, %c0_0] : memref<256x32xf32, #tpu.memory_space<vmem>>, vector<256x32xf32>
    %1 = arith.truncf %0 : vector<256x32xf32> to vector<256x32xbf16>
    %c0_1 = arith.constant 0 : index
    %c0_2 = arith.constant 0 : index
    %2 = vector.load %arg1[%c0_1, %c0_2] : memref<32x128xbf16, #tpu.memory_space<vmem>>, vector<32x128xbf16>
    %cst = arith.constant dense<0.000000e+00> : vector<256x128xf32>
    %3 = tpu.matmul %1, %2, %cst {dimension_numbers = #tpu.dot_dimension_numbers<[1], [0], [0], [1], [0, 0, 1, 1], [], []>} : vector<256x32xbf16>, vector<32x128xbf16>, vector<256x128xf32> -> vector<256x128xf32>
    %cst_3 = arith.constant dense<0.000000e+00> : vector<128xf32>
    %4 = vector.multi_reduction <add>, %3, %cst_3 [0] : vector<256x128xf32> to vector<128xf32>
    %5 = vector.shape_cast %4 : vector<128xf32> to vector<1x128xf32>
    %cst_4 = arith.constant 3.906250e-03 : f32
    %6 = vector.broadcast %cst_4 : f32 to vector<1x128xf32>
    %7 = arith.mulf %5, %6 : vector<1x128xf32>
    %8 = arith.mulf %3, %3 : vector<256x128xf32>
    %cst_5 = arith.constant dense<0.000000e+00> : vector<128xf32>
    %9 = vector.multi_reduction <add>, %8, %cst_5 [0] : vector<256x128xf32> to vector<128xf32>
    %10 = vector.shape_cast %9 : vector<128xf32> to vector<1x128xf32>
    %cst_6 = arith.constant 3.906250e-03 : f32
    %11 = vector.broadcast %cst_6 : f32 to vector<1x128xf32>
    %12 = arith.mulf %10, %11 : vector<1x128xf32>
    %13 = arith.mulf %7, %7 : vector<1x128xf32>
    %14 = arith.subf %12, %13 : vector<1x128xf32>
    %cst_7 = arith.constant 0.000000e+00 : f32
    %15 = vector.broadcast %cst_7 : f32 to vector<1x128xf32>
    %16 = arith.maximumf %14, %15 : vector<1x128xf32>
    %c0_8 = arith.constant 0 : index
    %c0_9 = arith.constant 0 : index
    %17 = vector.load %arg3[%c0_8, %c0_9] : memref<1x128xf32, #tpu.memory_space<vmem>>, vector<1x128xf32>
    %cst_10 = arith.constant 9.99999974E-6 : f32
    %18 = vector.broadcast %cst_10 : f32 to vector<1x128xf32>
    %19 = arith.addf %16, %18 : vector<1x128xf32>
    %20 = math.rsqrt %19 : vector<1x128xf32>
    %21 = arith.mulf %17, %20 : vector<1x128xf32>
    %c0_11 = arith.constant 0 : index
    %c0_12 = arith.constant 0 : index
    %22 = vector.load %arg4[%c0_11, %c0_12] : memref<1x128xf32, #tpu.memory_space<vmem>>, vector<1x128xf32>
    %23 = arith.mulf %7, %21 : vector<1x128xf32>
    %24 = arith.subf %22, %23 : vector<1x128xf32>
    %25 = vector.broadcast %21 : vector<1x128xf32> to vector<256x128xf32>
    %26 = arith.mulf %3, %25 : vector<256x128xf32>
    %27 = vector.broadcast %24 : vector<1x128xf32> to vector<256x128xf32>
    %28 = arith.addf %26, %27 : vector<256x128xf32>
    %cst_13 = arith.constant 0.000000e+00 : f32
    %29 = vector.broadcast %cst_13 : f32 to vector<256x128xf32>
    %30 = arith.maximumf %28, %29 : vector<256x128xf32>
    %31 = arith.truncf %30 : vector<256x128xf32> to vector<256x128xbf16>
    %c0_14 = arith.constant 0 : index
    %c0_15 = arith.constant 0 : index
    %32 = vector.load %arg2[%c0_14, %c0_15] : memref<128x128xbf16, #tpu.memory_space<vmem>>, vector<128x128xbf16>
    %cst_16 = arith.constant dense<0.000000e+00> : vector<256x128xf32>
    %33 = tpu.matmul %31, %32, %cst_16 {dimension_numbers = #tpu.dot_dimension_numbers<[1], [0], [0], [1], [0, 0, 1, 1], [], []>} : vector<256x128xbf16>, vector<128x128xbf16>, vector<256x128xf32> -> vector<256x128xf32>
    %cst_17 = arith.constant dense<0.000000e+00> : vector<128xf32>
    %34 = vector.multi_reduction <add>, %33, %cst_17 [0] : vector<256x128xf32> to vector<128xf32>
    %35 = vector.shape_cast %34 : vector<128xf32> to vector<1x128xf32>
    %cst_18 = arith.constant 3.906250e-03 : f32
    %36 = vector.broadcast %cst_18 : f32 to vector<1x128xf32>
    %37 = arith.mulf %35, %36 : vector<1x128xf32>
    %38 = arith.mulf %33, %33 : vector<256x128xf32>
    %cst_19 = arith.constant dense<0.000000e+00> : vector<128xf32>
    %39 = vector.multi_reduction <add>, %38, %cst_19 [0] : vector<256x128xf32> to vector<128xf32>
    %40 = vector.shape_cast %39 : vector<128xf32> to vector<1x128xf32>
    %cst_20 = arith.constant 3.906250e-03 : f32
    %41 = vector.broadcast %cst_20 : f32 to vector<1x128xf32>
    %42 = arith.mulf %40, %41 : vector<1x128xf32>
    %43 = arith.mulf %37, %37 : vector<1x128xf32>
    %44 = arith.subf %42, %43 : vector<1x128xf32>
    %cst_21 = arith.constant 0.000000e+00 : f32
    %45 = vector.broadcast %cst_21 : f32 to vector<1x128xf32>
    %46 = arith.maximumf %44, %45 : vector<1x128xf32>
    %c0_22 = arith.constant 0 : index
    %c0_23 = arith.constant 0 : index
    %47 = vector.load %arg5[%c0_22, %c0_23] : memref<1x128xf32, #tpu.memory_space<vmem>>, vector<1x128xf32>
    %cst_24 = arith.constant 9.99999974E-6 : f32
    %48 = vector.broadcast %cst_24 : f32 to vector<1x128xf32>
    %49 = arith.addf %46, %48 : vector<1x128xf32>
    %50 = math.rsqrt %49 : vector<1x128xf32>
    %51 = arith.mulf %47, %50 : vector<1x128xf32>
    %c0_25 = arith.constant 0 : index
    %c0_26 = arith.constant 0 : index
    %52 = vector.load %arg6[%c0_25, %c0_26] : memref<1x128xf32, #tpu.memory_space<vmem>>, vector<1x128xf32>
    %53 = arith.mulf %37, %51 : vector<1x128xf32>
    %54 = arith.subf %52, %53 : vector<1x128xf32>
    %55 = vector.broadcast %51 : vector<1x128xf32> to vector<256x128xf32>
    %56 = arith.mulf %33, %55 : vector<256x128xf32>
    %57 = vector.broadcast %54 : vector<1x128xf32> to vector<256x128xf32>
    %58 = arith.addf %56, %57 : vector<256x128xf32>
    %cst_27 = arith.constant 0.000000e+00 : f32
    %59 = vector.broadcast %cst_27 : f32 to vector<256x128xf32>
    %60 = arith.maximumf %58, %59 : vector<256x128xf32>
    %61 = vector.shape_cast %60 : vector<256x128xf32> to vector<16x16x128xf32>
    %cst_28 = arith.constant dense<0xFF800000> : vector<16x128xf32>
    %62 = vector.multi_reduction <maximumf>, %61, %cst_28 [1] : vector<16x16x128xf32> to vector<16x128xf32>
    %c0_29 = arith.constant 0 : index
    %c0_30 = arith.constant 0 : index
    %63 = vector.load %arg7[%c0_29, %c0_30] : memref<16x128xf32, #tpu.memory_space<vmem>>, vector<16x128xf32>
    tpu.vector_store %arg7[%c0_29, %c0_30], %62 {strides = array<i32>} : memref<16x128xf32, #tpu.memory_space<vmem>>, vector<16x128xf32>,
    return
  }
}

</mosaic_0001>

<llo_original>
// kernel: tpu_custom_call.1
$region0: #{tpu_custom_call.1}
  #allocation0 [shape = 'u32[]', space=smem, size = 0x4, offset = 0x4, fixed_abs, tag = 'smem constant byte address 0x4 - core index']
  #allocation1 [shape = 'u32[144,128]{1,0:T(1,128)}', space=vmem, size = 0x12000, scoped, tag = 'internal scratch']
  %s0 = inlined_call_operand.vmem [shape: f32[256,32], index: 0, kind: input, shape index: {}]
  %s1 = inlined_call_operand.vmem [shape: bf16[32,128], index: 1, kind: input, shape index: {}]
  %s2 = inlined_call_operand.vmem [shape: bf16[128,128], index: 2, kind: input, shape index: {}]
  %s3 = inlined_call_operand.vmem [shape: f32[1,128], index: 3, kind: input, shape index: {}]
  %s4 = inlined_call_operand.vmem [shape: f32[1,128], index: 4, kind: input, shape index: {}]
  %s5 = inlined_call_operand.vmem [shape: f32[1,128], index: 5, kind: input, shape index: {}]
  %s6 = inlined_call_operand.vmem [shape: f32[1,128], index: 6, kind: input, shape index: {}]
  %s7 = inlined_call_operand.hbm [shape: f32[16,128], index: 7, kind: output, shape index: {}]
  %s8 = sld [smem:[#allocation0]]
  $region38: #{tpu_custom_call.1} parent=0
    _
  %s10 = ssub.s32 1, %s8
  %s11 = scalar_select 0, %s10, %s8
  $region1: #{tpu_custom_call.1} parent=0
    #allocation2 [shape = 'u8[8192]{0}', space=vmem, size = 0x2000, scoped, tag = 'output window, operand 0, single buffered']
    #allocation3 [shape = 's32[1]{0}', space=sflag, size = 0x4, scoped, tag = 'scoped memory for tpu_custom_call.1']
    %12 = vsyncpa [#allocation3], 0
    // Predicated region
    $region2: #{tpu_custom_call.1} parent=1 // pred_check
      _
    $region3: #{tpu_custom_call.1} parent=1 // pred_check_branch
      %14 = sbr.rel (0) target = $region5
    $region4: #{tpu_custom_call.1} parent=1 // pred_region
      _
    $region5: #{tpu_custom_call.1} parent=1 // pred_fallthru
      _
    // Predicated region
    $region6: #{tpu_custom_call.1} parent=1 // pred_check
      _
    $region7: #{tpu_custom_call.1} parent=1 // pred_check_branch
      %16 = sbr.rel (0) target = $region9
    $region8: #{tpu_custom_call.1} parent=1 // pred_region
      _
    $region9: #{tpu_custom_call.1} parent=1 // pred_fallthru
      _
    // Predicated region
    $region10: #{tpu_custom_call.1} parent=1 // pred_check
      _
    $region11: #{tpu_custom_call.1} parent=1 // pred_check_branch
      %18 = sbr.rel (0) target = $region13
    $region12: #{tpu_custom_call.1} parent=1 // pred_region
      _
    $region13: #{tpu_custom_call.1} parent=1 // pred_fallthru
      _
    // Predicated region
    $region14: #{tpu_custom_call.1} parent=1 // pred_check
      _
    $region15: #{tpu_custom_call.1} parent=1 // pred_check_branch
      %20 = sbr.rel (0) target = $region17
    $region16: #{tpu_custom_call.1} parent=1 // pred_region
      _
    $region17: #{tpu_custom_call.1} parent=1 // pred_fallthru
      _
    // Predicated region
    $region18: #{tpu_custom_call.1} parent=1 // pred_check
      _
    $region19: #{tpu_custom_call.1} parent=1 // pred_check_branch
      %22 = sbr.rel (0) target = $region21
    $region20: #{tpu_custom_call.1} parent=1 // pred_region
      _
    $region21: #{tpu_custom_call.1} parent=1 // pred_fallthru
      _
    // Predicated region
    $region22: #{tpu_custom_call.1} parent=1 // pred_check
      _
    $region23: #{tpu_custom_call.1} parent=1 // pred_check_branch
      %24 = sbr.rel (0) target = $region25
    $region24: #{tpu_custom_call.1} parent=1 // pred_region
      _
    $region25: #{tpu_custom_call.1} parent=1 // pred_fallthru
      _
    // Predicated region
    $region26: #{tpu_custom_call.1} parent=1 // pred_check
      _
    $region27: #{tpu_custom_call.1} parent=1 // pred_check_branch
      %26 = sbr.rel (0) target = $region29
    $region28: #{tpu_custom_call.1} parent=1 // pred_region
      _
    $region29: #{tpu_custom_call.1} parent=1 // pred_fallthru
      _
    %v28 = vld [vmem:[%s0] sm:$0xff]
    %v29 = vld [vmem:[%s0 + $0x8] sm:$0xff]
    %v30 = vld [vmem:[%s0 + $0x10] sm:$0xff]
    %v31 = vld [vmem:[%s0 + $0x18] sm:$0xff]
    %v32 = vld [vmem:[%s0 + $0x20] sm:$0xff]
    %v33 = vld [vmem:[%s0 + $0x28] sm:$0xff]
    %v34 = vld [vmem:[%s0 + $0x30] sm:$0xff]
    %v35 = vld [vmem:[%s0 + $0x38] sm:$0xff]
    %v36 = vld [vmem:[%s0 + $0x40] sm:$0xff]
    %v37 = vld [vmem:[%s0 + $0x48] sm:$0xff]
    %v38 = vld [vmem:[%s0 + $0x50] sm:$0xff]
    %v39 = vld [vmem:[%s0 + $0x58] sm:$0xff]
    %v40 = vld [vmem:[%s0 + $0x60] sm:$0xff]
    %v41 = vld [vmem:[%s0 + $0x68] sm:$0xff]
    %v42 = vld [vmem:[%s0 + $0x70] sm:$0xff]
    %v43 = vld [vmem:[%s0 + $0x78] sm:$0xff]
    %v44 = vld [vmem:[%s0 + $0x80] sm:$0xff]
    %v45 = vld [vmem:[%s0 + $0x88] sm:$0xff]
    %v46 = vld [vmem:[%s0 + $0x90] sm:$0xff]
    %v47 = vld [vmem:[%s0 + $0x98] sm:$0xff]
    %v48 = vld [vmem:[%s0 + $0xa0] sm:$0xff]
    %v49 = vld [vmem:[%s0 + $0xa8] sm:$0xff]
    %v50 = vld [vmem:[%s0 + $0xb0] sm:$0xff]
    %v51 = vld [vmem:[%s0 + $0xb8] sm:$0xff]
    %v52 = vld [vmem:[%s0 + $0xc0] sm:$0xff]
    %v53 = vld [vmem:[%s0 + $0xc8] sm:$0xff]
    %v54 = vld [vmem:[%s0 + $0xd0] sm:$0xff]
    %v55 = vld [vmem:[%s0 + $0xd8] sm:$0xff]
    %v56 = vld [vmem:[%s0 + $0xe0] sm:$0xff]
    %v57 = vld [vmem:[%s0 + $0xe8] sm:$0xff]
    %v58 = vld [vmem:[%s0 + $0xf0] sm:$0xff]
    %v59 = vld [vmem:[%s0 + $0xf8] sm:$0xff]
    %v60 = vpack.c.bf16 %v29, %v28
    %v61 = vpack.c.bf16 %v31, %v30
    %v62 = vpack.c.bf16 %v33, %v32
    %v63 = vpack.c.bf16 %v35, %v34
    %v64 = vpack.c.bf16 %v37, %v36
    %v65 = vpack.c.bf16 %v39, %v38
    %v66 = vpack.c.bf16 %v41, %v40
    %v67 = vpack.c.bf16 %v43, %v42
    %v68 = vpack.c.bf16 %v45, %v44
    %v69 = vpack.c.bf16 %v47, %v46
    %v70 = vpack.c.bf16 %v49, %v48
    %v71 = vpack.c.bf16 %v51, %v50
    %v72 = vpack.c.bf16 %v53, %v52
    %v73 = vpack.c.bf16 %v55, %v54
    %v74 = vpack.c.bf16 %v57, %v56
    %v75 = vpack.c.bf16 %v59, %v58
    %v76 = vld [vmem:[%s1] sm:$0xf]
    %v77 = vld [vmem:[%s1 + $0x4] sm:$0xf]
    %v78 = vld [vmem:[%s1 + $0x8] sm:$0xf]
    %v79 = vld [vmem:[%s1 + $0xc] sm:$0xf]
    %v84 = vunpack.c.l.b16 %v76
    %v85 = vunpack.c.l.b16 %v77
    %v86 = vunpack.c.l.b16 %v78
    %v87 = vunpack.c.l.b16 %v79
    %v88 = vpack.c.b16 %v85, %v84
    %v89 = vpack.c.b16 %v87, %v86
    %vm92 = vcmask 261120
    %v94 = vsel %vm92, %v60, 0
    %v97 = vsel %vm92, %v61, 0
    %v100 = vsel %vm92, %v62, 0
    %v103 = vsel %vm92, %v63, 0
    %v106 = vsel %vm92, %v64, 0
    %v109 = vsel %vm92, %v65, 0
    %v112 = vsel %vm92, %v66, 0
    %v115 = vsel %vm92, %v67, 0
    %v118 = vsel %vm92, %v68, 0
    %v121 = vsel %vm92, %v69, 0
    %v124 = vsel %vm92, %v70, 0
    %v127 = vsel %vm92, %v71, 0
    %v130 = vsel %vm92, %v72, 0
    %v133 = vsel %vm92, %v73, 0
    %v136 = vsel %vm92, %v74, 0
    %v139 = vsel %vm92, %v75, 0
    %141 = vmatprep.subr.bf16.mxu0 0
    %142 = vmatpush1.bf16.msra.mxu0 %v88
    %143 = vmatprep.subr.bf16.mxu0 0
    %144 = vmatpush1.bf16.msra.mxu0 %v89
    %145 = vmatprep.subr.bf16.mxu0 0
    %146 = vmatpush1.bf16.msra.mxu0 0
    %147 = vmatprep.subr.bf16.mxu0 0
    %148 = vmatpush1.bf16.msra.mxu0 0
    %149 = vmatprep.subr.bf16.mxu0 0
    %150 = vmatpush1.bf16.msra.mxu0 0
    %151 = vmatprep.subr.bf16.mxu0 0
    %152 = vmatpush1.bf16.msra.mxu0 0
    %153 = vmatprep.subr.bf16.mxu0 0
    %154 = vmatpush1.bf16.msra.mxu0 0
    %155 = vmatprep.subr.bf16.mxu0 0
    %156 = vmatpush1.bf16.msra.mxu0 0
    %157 = vmatprep.subr.bf16.mxu0 0
    %158 = vmatpush1.bf16.msra.mxu0 0
    %159 = vmatprep.subr.bf16.mxu0 0
    %160 = vmatpush1.bf16.msra.mxu0 0
    %161 = vmatprep.subr.bf16.mxu0 0
    %162 = vmatpush1.bf16.msra.mxu0 0
    %163 = vmatprep.subr.bf16.mxu0 0
    %164 = vmatpush1.bf16.msra.mxu0 0
    %165 = vmatprep.subr.bf16.mxu0 0
    %166 = vmatpush1.bf16.msra.mxu0 0
    %167 = vmatprep.subr.bf16.mxu0 0
    %168 = vmatpush1.bf16.msra.mxu0 0
    %169 = vmatprep.subr.bf16.mxu0 0
    %170 = vmatpush1.bf16.msra.mxu0 0
    %171 = vmatprep.subr.bf16.mxu0 0
    %172 = vmatpush1.bf16.msra.mxu0 0
    %173 = vmatprep.mubr.bf16.mxu0 0
    %174 = vmatmul.mubr.bf16.gmra.mrb[0].mxu0 %v94
    %v175 = vpop.f32.mrb[0].mxu0
    %v176 = vadd.f32 0.0, %v175
    %v177 = vpop.f32.mrb[0].mxu0
    %v178 = vpop.f32.mrb[0].mxu0
    %v179 = vadd.f32 0.0, %v178
    %v180 = vpop.f32.mrb[0].mxu0
    %181 = vmatprep.mubr.bf16.mxu0 0
    %182 = vmatmul.mubr.bf16.gmra.mrb[0].mxu0 %v97
    %v183 = vpop.f32.mrb[0].mxu0
    %v184 = vadd.f32 0.0, %v183
    %v185 = vpop.f32.mrb[0].mxu0
    %v186 = vpop.f32.mrb[0].mxu0
    %v187 = vadd.f32 0.0, %v186
    %v188 = vpop.f32.mrb[0].mxu0
    %189 = vmatprep.mubr.bf16.mxu0 0
    %190 = vmatmul.mubr.bf16.gmra.mrb[0].mxu0 %v100
    %v191 = vpop.f32.mrb[0].mxu0
    %v192 = vadd.f32 0.0, %v191
    %v193 = vpop.f32.mrb[0].mxu0
    %v194 = vpop.f32.mrb[0].mxu0
    %v195 = vadd.f32 0.0, %v194
    %v196 = vpop.f32.mrb[0].mxu0
    %197 = vmatprep.mubr.bf16.mxu0 0
    %198 = vmatmul.mubr.bf16.gmra.mrb[0].mxu0 %v103
    %v199 = vpop.f32.mrb[0].mxu0
    %v200 = vadd.f32 0.0, %v199
    %v201 = vpop.f32.mrb[0].mxu0
    %v202 = vpop.f32.mrb[0].mxu0
    %v203 = vadd.f32 0.0, %v202
    %v204 = vpop.f32.mrb[0].mxu0
    %205 = vmatprep.mubr.bf16.mxu0 0
    %206 = vmatmul.mubr.bf16.gmra.mrb[0].mxu0 %v106
    %v207 = vpop.f32.mrb[0].mxu0
    %v208 = vadd.f32 0.0, %v207
    %v209 = vpop.f32.mrb[0].mxu0
    %v210 = vpop.f32.mrb[0].mxu0
    %v211 = vadd.f32 0.0, %v210
    %v212 = vpop.f32.mrb[0].mxu0
    %213 = vmatprep.mubr.bf16.mxu0 0
    %214 = vmatmul.mubr.bf16.gmra.mrb[0].mxu0 %v109
    %v215 = vpop.f32.mrb[0].mxu0
    %v216 = vadd.f32 0.0, %v215
    %v217 = vpop.f32.mrb[0].mxu0
    %v218 = vpop.f32.mrb[0].mxu0
    %v219 = vadd.f32 0.0, %v218
    %v220 = vpop.f32.mrb[0].mxu0
    %221 = vmatprep.mubr.bf16.mxu0 0
    %222 = vmatmul.mubr.bf16.gmra.mrb[0].mxu0 %v112
    %v223 = vpop.f32.mrb[0].mxu0
    %v224 = vadd.f32 0.0, %v223
    %v225 = vpop.f32.mrb[0].mxu0
    %v226 = vpop.f32.mrb[0].mxu0
    %v227 = vadd.f32 0.0, %v226
    %v228 = vpop.f32.mrb[0].mxu0
    %229 = vmatprep.mubr.bf16.mxu0 0
    %230 = vmatmul.mubr.bf16.gmra.mrb[0].mxu0 %v115
    %v231 = vpop.f32.mrb[0].mxu0
    %v232 = vadd.f32 0.0, %v231
    %v233 = vpop.f32.mrb[0].mxu0
    %v234 = vpop.f32.mrb[0].mxu0
    %v235 = vadd.f32 0.0, %v234
    %v236 = vpop.f32.mrb[0].mxu0
    %237 = vmatprep.mubr.bf16.mxu0 0
    %238 = vmatmul.mubr.bf16.gmra.mrb[0].mxu0 %v118
    %v239 = vpop.f32.mrb[0].mxu0
    %v240 = vadd.f32 0.0, %v239
    %v241 = vpop.f32.mrb[0].mxu0
    %v242 = vpop.f32.mrb[0].mxu0
    %v243 = vadd.f32 0.0, %v242
    %v244 = vpop.f32.mrb[0].mxu0
    %245 = vmatprep.mubr.bf16.mxu0 0
    %246 = vmatmul.mubr.bf16.gmra.mrb[0].mxu0 %v121
    %v247 = vpop.f32.mrb[0].mxu0
    %v248 = vadd.f32 0.0, %v247
    %v249 = vpop.f32.mrb[0].mxu0
    %v250 = vpop.f32.mrb[0].mxu0
    %v251 = vadd.f32 0.0, %v250
    %v252 = vpop.f32.mrb[0].mxu0
    %253 = vmatprep.mubr.bf16.mxu0 0
    %254 = vmatmul.mubr.bf16.gmra.mrb[0].mxu0 %v124
    %v255 = vpop.f32.mrb[0].mxu0
    %v256 = vadd.f32 0.0, %v255
    %v257 = vpop.f32.mrb[0].mxu0
    %v258 = vpop.f32.mrb[0].mxu0
    %v259 = vadd.f32 0.0, %v258
    %v260 = vpop.f32.mrb[0].mxu0
    %261 = vmatprep.mubr.bf16.mxu0 0
    %262 = vmatmul.mubr.bf16.gmra.mrb[0].mxu0 %v127
    %v263 = vpop.f32.mrb[0].mxu0
    %v264 = vadd.f32 0.0, %v263
    %v265 = vpop.f32.mrb[0].mxu0
    %v266 = vpop.f32.mrb[0].mxu0
    %v267 = vadd.f32 0.0, %v266
    %v268 = vpop.f32.mrb[0].mxu0
    %269 = vmatprep.mubr.bf16.mxu0 0
    %270 = vmatmul.mubr.bf16.gmra.mrb[0].mxu0 %v130
    %v271 = vpop.f32.mrb[0].mxu0
    %v272 = vadd.f32 0.0, %v271
    %v273 = vpop.f32.mrb[0].mxu0
    %v274 = vpop.f32.mrb[0].mxu0
    %v275 = vadd.f32 0.0, %v274
    %v276 = vpop.f32.mrb[0].mxu0
    %277 = vmatprep.mubr.bf16.mxu0 0
    %278 = vmatmul.mubr.bf16.gmra.mrb[0].mxu0 %v133
    %v279 = vpop.f32.mrb[0].mxu0
    %v280 = vadd.f32 0.0, %v279
    %v281 = vpop.f32.mrb[0].mxu0
    %v282 = vpop.f32.mrb[0].mxu0
    %v283 = vadd.f32 0.0, %v282
    %v284 = vpop.f32.mrb[0].mxu0
    %285 = vmatprep.mubr.bf16.mxu0 0
    %286 = vmatmul.mubr.bf16.gmra.mrb[0].mxu0 %v136
    %v287 = vpop.f32.mrb[0].mxu0
    %v288 = vadd.f32 0.0, %v287
    %v289 = vpop.f32.mrb[0].mxu0
    %v290 = vpop.f32.mrb[0].mxu0
    %v291 = vadd.f32 0.0, %v290
    %v292 = vpop.f32.mrb[0].mxu0
    %293 = vmatprep.mubr.bf16.mxu0 0
    %294 = vmatmul.mubr.bf16.gmra.mrb[0].mxu0 %v139
    %v295 = vpop.f32.mrb[0].mxu0
    %v296 = vadd.f32 0.0, %v295
    %v297 = vpop.f32.mrb[0].mxu0
    %v298 = vpop.f32.mrb[0].mxu0
    %v299 = vadd.f32 0.0, %v298
    %v300 = vpop.f32.mrb[0].mxu0
    %301 = vdwg.mxu0
    %v302 = vadd.f32 %v176, %v179
    %v303 = vadd.f32 %v302, %v184
    %v304 = vadd.f32 %v303, %v187
    %v305 = vadd.f32 %v304, %v192
    %v306 = vadd.f32 %v305, %v195
    %v307 = vadd.f32 %v306, %v200
    %v308 = vadd.f32 %v307, %v203
    %v309 = vadd.f32 %v308, %v208
    %v310 = vadd.f32 %v309, %v211
    %v311 = vadd.f32 %v310, %v216
    %v312 = vadd.f32 %v311, %v219
    %v313 = vadd.f32 %v312, %v224
    %v314 = vadd.f32 %v313, %v227
    %v315 = vadd.f32 %v314, %v232
    %v316 = vadd.f32 %v315, %v235
    %v317 = vadd.f32 %v316, %v240
    %v318 = vadd.f32 %v317, %v243
    %v319 = vadd.f32 %v318, %v248
    %v320 = vadd.f32 %v319, %v251
    %v321 = vadd.f32 %v320, %v256
    %v322 = vadd.f32 %v321, %v259
    %v323 = vadd.f32 %v322, %v264
    %v324 = vadd.f32 %v323, %v267
    %v325 = vadd.f32 %v324, %v272
    %v326 = vadd.f32 %v325, %v275
    %v327 = vadd.f32 %v326, %v280
    %v328 = vadd.f32 %v327, %v283
    %v329 = vadd.f32 %v328, %v288
    %v330 = vadd.f32 %v329, %v291
    %v331 = vadd.f32 %v330, %v296
    %v332 = vadd.f32 %v331, %v299
    %v333 = vrot.slane %v332, 4
    %v334 = vadd.f32 %v332, %v333
    %v335 = vrot.slane %v334, 2
    %v336 = vadd.f32 %v334, %v335
    %v337 = vrot.slane %v336, 1
    %v338 = vadd.f32 %v336, %v337
    %v339 = vmul.f32 %v338, 0.00390625
    %v340 = vmul.f32 %v176, %v176
    %v341 = vmul.f32 %v179, %v179
    %v342 = vmul.f32 %v184, %v184
    %v343 = vmul.f32 %v187, %v187
    %v344 = vmul.f32 %v192, %v192
    %v345 = vmul.f32 %v195, %v195
    %v346 = vmul.f32 %v200, %v200
    %v347 = vmul.f32 %v203, %v203
    %v348 = vmul.f32 %v208, %v208
    %v349 = vmul.f32 %v211, %v211
    %v350 = vmul.f32 %v216, %v216
    %v351 = vmul.f32 %v219, %v219
    %v352 = vmul.f32 %v224, %v224
    %v353 = vmul.f32 %v227, %v227
    %v354 = vmul.f32 %v232, %v232
    %v355 = vmul.f32 %v235, %v235
    %v356 = vmul.f32 %v240, %v240
    %v357 = vmul.f32 %v243, %v243
    %v358 = vmul.f32 %v248, %v248
    %v359 = vmul.f32 %v251, %v251
    %v360 = vmul.f32 %v256, %v256
    %v361 = vmul.f32 %v259, %v259
    %v362 = vmul.f32 %v264, %v264
    %v363 = vmul.f32 %v267, %v267
    %v364 = vmul.f32 %v272, %v272
    %v365 = vmul.f32 %v275, %v275
    %v366 = vmul.f32 %v280, %v280
    %v367 = vmul.f32 %v283, %v283
    %v368 = vmul.f32 %v288, %v288
    %v369 = vmul.f32 %v291, %v291
    %v370 = vmul.f32 %v296, %v296
    %v371 = vmul.f32 %v299, %v299
    %v372 = vadd.f32 %v340, %v341
    %v373 = vadd.f32 %v372, %v342
    %v374 = vadd.f32 %v373, %v343
    %v375 = vadd.f32 %v374, %v344
    %v376 = vadd.f32 %v375, %v345
    %v377 = vadd.f32 %v376, %v346
    %v378 = vadd.f32 %v377, %v347
    %v379 = vadd.f32 %v378, %v348
    %v380 = vadd.f32 %v379, %v349
    %v381 = vadd.f32 %v380, %v350
    %v382 = vadd.f32 %v381, %v351
    %v383 = vadd.f32 %v382, %v352
    %v384 = vadd.f32 %v383, %v353
    %v385 = vadd.f32 %v384, %v354
    %v386 = vadd.f32 %v385, %v355
    %v387 = vadd.f32 %v386, %v356
    %v388 = vadd.f32 %v387, %v357
    %v389 = vadd.f32 %v388, %v358
    %v390 = vadd.f32 %v389, %v359
    %v391 = vadd.f32 %v390, %v360
    %v392 = vadd.f32 %v391, %v361
    %v393 = vadd.f32 %v392, %v362
    %v394 = vadd.f32 %v393, %v363
    %v395 = vadd.f32 %v394, %v364
    %v396 = vadd.f32 %v395, %v365
    %v397 = vadd.f32 %v396, %v366
    %v398 = vadd.f32 %v397, %v367
    %v399 = vadd.f32 %v398, %v368
    %v400 = vadd.f32 %v399, %v369
    %v401 = vadd.f32 %v400, %v370
    %v402 = vadd.f32 %v401, %v371
    %v403 = vrot.slane %v402, 4
    %v404 = vadd.f32 %v402, %v403
    %v405 = vrot.slane %v404, 2
    %v406 = vadd.f32 %v404, %v405
    %v407 = vrot.slane %v406, 1
    %v408 = vadd.f32 %v406, %v407
    %v409 = vmul.f32 %v408, 0.00390625
    %v410 = vmul.f32 %v339, %v339
    %v411 = vsub.f32 %v409, %v410
    %v412 = vmax.f32 %v411, 0.0
    %v413 = vld [vmem:[%s3] sm:$0x1]
    %v414 = vadd.f32 %v412, 1e-05
    %v415 = vrsqrt.pop %v414
    %v416 = vmul.f32 %v413, %v415
    %v417 = vld [vmem:[%s4] sm:$0x1]
    %v418 = vmul.f32 %v339, %v416
    %v419 = vsub.f32 %v417, %v418
    %v421 = vlaneseq
    %v422 = vshrl.u32 %v421, 7
    %v423 = vsub.s32 0, %v422
    %v424 = vrot.slane %v416, %v423
    %v426 = vmul.f32 %v176, %v424
    %v427 = vmul.f32 %v179, %v424
    %v428 = vmul.f32 %v184, %v424
    %v429 = vmul.f32 %v187, %v424
    %v430 = vmul.f32 %v192, %v424
    %v431 = vmul.f32 %v195, %v424
    %v432 = vmul.f32 %v200, %v424
    %v433 = vmul.f32 %v203, %v424
    %v434 = vmul.f32 %v208, %v424
    %v435 = vmul.f32 %v211, %v424
    %v436 = vmul.f32 %v216, %v424
    %v437 = vmul.f32 %v219, %v424
    %v438 = vmul.f32 %v224, %v424
    %v439 = vmul.f32 %v227, %v424
    %v440 = vmul.f32 %v232, %v424
    %v441 = vmul.f32 %v235, %v424
    %v442 = vmul.f32 %v240, %v424
    %v443 = vmul.f32 %v243, %v424
    %v444 = vmul.f32 %v248, %v424
    %v445 = vmul.f32 %v251, %v424
    %v446 = vmul.f32 %v256, %v424
    %v447 = vmul.f32 %v259, %v424
    %v448 = vmul.f32 %v264, %v424
    %v449 = vmul.f32 %v267, %v424
    %v450 = vmul.f32 %v272, %v424
    %v451 = vmul.f32 %v275, %v424
    %v452 = vmul.f32 %v280, %v424
    %v453 = vmul.f32 %v283, %v424
    %v454 = vmul.f32 %v288, %v424
    %v455 = vmul.f32 %v291, %v424
    %v456 = vmul.f32 %v296, %v424
    %v457 = vmul.f32 %v299, %v424
    %v459 = vlaneseq
    %v460 = vshrl.u32 %v459, 7
    %v461 = vsub.s32 0, %v460
    %v462 = vrot.slane %v419, %v461
    %v464 = vadd.f32 %v426, %v462
    %v465 = vadd.f32 %v427, %v462
    %v466 = vadd.f32 %v428, %v462
    %v467 = vadd.f32 %v429, %v462
    %v468 = vadd.f32 %v430, %v462
    %v469 = vadd.f32 %v431, %v462
    %v470 = vadd.f32 %v432, %v462
    %v471 = vadd.f32 %v433, %v462
    %v472 = vadd.f32 %v434, %v462
    %v473 = vadd.f32 %v435, %v462
    %v474 = vadd.f32 %v436, %v462
    %v475 = vadd.f32 %v437, %v462
    %v476 = vadd.f32 %v438, %v462
    %v477 = vadd.f32 %v439, %v462
    %v478 = vadd.f32 %v440, %v462
    %v479 = vadd.f32 %v441, %v462
    %v480 = vadd.f32 %v442, %v462
    %v481 = vadd.f32 %v443, %v462
    %v482 = vadd.f32 %v444, %v462
    %v483 = vadd.f32 %v445, %v462
    %v484 = vadd.f32 %v446, %v462
    %v485 = vadd.f32 %v447, %v462
    %v486 = vadd.f32 %v448, %v462
    %v487 = vadd.f32 %v449, %v462
    %v488 = vadd.f32 %v450, %v462
    %v489 = vadd.f32 %v451, %v462
    %v490 = vadd.f32 %v452, %v462
    %v491 = vadd.f32 %v453, %v462
    %v492 = vadd.f32 %v454, %v462
    %v493 = vadd.f32 %v455, %v462
    %v494 = vadd.f32 %v456, %v462
    %v495 = vadd.f32 %v457, %v462
    %v496 = vmax.f32 %v464, 0.0
    %v497 = vmax.f32 %v465, 0.0
    %v498 = vmax.f32 %v466, 0.0
    %v499 = vmax.f32 %v467, 0.0
    %v500 = vmax.f32 %v468, 0.0
    %v501 = vmax.f32 %v469, 0.0
    %v502 = vmax.f32 %v470, 0.0
    %v503 = vmax.f32 %v471, 0.0
    %v504 = vmax.f32 %v472, 0.0
    %v505 = vmax.f32 %v473, 0.0
    %v506 = vmax.f32 %v474, 0.0
    %v507 = vmax.f32 %v475, 0.0
    %v508 = vmax.f32 %v476, 0.0
    %v509 = vmax.f32 %v477, 0.0
    %v510 = vmax.f32 %v478, 0.0
    %v511 = vmax.f32 %v479, 0.0
    %v512 = vmax.f32 %v480, 0.0
    %v513 = vmax.f32 %v481, 0.0
    %v514 = vmax.f32 %v482, 0.0
    %v515 = vmax.f32 %v483, 0.0
    %v516 = vmax.f32 %v484, 0.0
    %v517 = vmax.f32 %v485, 0.0
    %v518 = vmax.f32 %v486, 0.0
    %v519 = vmax.f32 %v487, 0.0
    %v520 = vmax.f32 %v488, 0.0
    %v521 = vmax.f32 %v489, 0.0
    %v522 = vmax.f32 %v490, 0.0
    %v523 = vmax.f32 %v491, 0.0
    %v524 = vmax.f32 %v492, 0.0
    %v525 = vmax.f32 %v493, 0.0
    %v526 = vmax.f32 %v494, 0.0
    %v527 = vmax.f32 %v495, 0.0
    %v528 = vpack.c.bf16 %v497, %v496
    %v529 = vpack.c.bf16 %v499, %v498
    %v530 = vpack.c.bf16 %v501, %v500
    %v531 = vpack.c.bf16 %v503, %v502
    %v532 = vpack.c.bf16 %v505, %v504
    %v533 = vpack.c.bf16 %v507, %v506
    %v534 = vpack.c.bf16 %v509, %v508
    %v535 = vpack.c.bf16 %v511, %v510
    %v536 = vpack.c.bf16 %v513, %v512
    %v537 = vpack.c.bf16 %v515, %v514
    %v538 = vpack.c.bf16 %v517, %v516
    %v539 = vpack.c.bf16 %v519, %v518
    %v540 = vpack.c.bf16 %v521, %v520
    %v541 = vpack.c.bf16 %v523, %v522
    %v542 = vpack.c.bf16 %v525, %v524
    %v543 = vpack.c.bf16 %v527, %v526
    %v544 = vld [vmem:[%s2] sm:$0xf]
    %v545 = vld [vmem:[%s2 + $0x4] sm:$0xf]
    %v546 = vld [vmem:[%s2 + $0x8] sm:$0xf]
    %v547 = vld [vmem:[%s2 + $0xc] sm:$0xf]
    %v548 = vld [vmem:[%s2 + $0x10] sm:$0xf]
    %v549 = vld [vmem:[%s2 + $0x14] sm:$0xf]
    %v550 = vld [vmem:[%s2 + $0x18] sm:$0xf]
    %v551 = vld [vmem:[%s2 + $0x1c] sm:$0xf]
    %v552 = vld [vmem:[%s2 + $0x20] sm:$0xf]
    %v553 = vld [vmem:[%s2 + $0x24] sm:$0xf]
    %v554 = vld [vmem:[%s2 + $0x28] sm:$0xf]
    %v555 = vld [vmem:[%s2 + $0x2c] sm:$0xf]
    %v556 = vld [vmem:[%s2 + $0x30] sm:$0xf]
    %v557 = vld [vmem:[%s2 + $0x34] sm:$0xf]
    %v558 = vld [vmem:[%s2 + $0x38] sm:$0xf]
    %v559 = vld [vmem:[%s2 + $0x3c] sm:$0xf]
    %v576 = vunpack.c.l.b16 %v544
    %v577 = vunpack.c.l.b16 %v545
    %v578 = vunpack.c.l.b16 %v546
    %v579 = vunpack.c.l.b16 %v547
    %v580 = vunpack.c.l.b16 %v548
    %v581 = vunpack.c.l.b16 %v549
    %v582 = vunpack.c.l.b16 %v550
    %v583 = vunpack.c.l.b16 %v551
    %v584 = vunpack.c.l.b16 %v552
    %v585 = vunpack.c.l.b16 %v553
    %v586 = vunpack.c.l.b16 %v554
    %v587 = vunpack.c.l.b16 %v555
    %v588 = vunpack.c.l.b16 %v556
    %v589 = vunpack.c.l.b16 %v557
    %v590 = vunpack.c.l.b16 %v558
    %v591 = vunpack.c.l.b16 %v559
    %v592 = vpack.c.b16 %v577, %v576
    %v593 = vpack.c.b16 %v579, %v578
    %v594 = vpack.c.b16 %v581, %v580
    %v595 = vpack.c.b16 %v583, %v582
    %v596 = vpack.c.b16 %v585, %v584
    %v597 = vpack.c.b16 %v587, %v586
    %v598 = vpack.c.b16 %v589, %v588
    %v599 = vpack.c.b16 %v591, %v590
    %608 = vmatprep.subr.bf16.mxu0 0
    %609 = vmatpush1.bf16.msra.mxu0 %v592
    %610 = vmatprep.subr.bf16.mxu0 0
    %611 = vmatpush1.bf16.msra.mxu0 %v593
    %612 = vmatprep.subr.bf16.mxu0 0
    %613 = vmatpush1.bf16.msra.mxu0 %v594
    %614 = vmatprep.subr.bf16.mxu0 0
    %615 = vmatpush1.bf16.msra.mxu0 %v595
    %616 = vmatprep.subr.bf16.mxu0 0
    %617 = vmatpush1.bf16.msra.mxu0 %v596
    %618 = vmatprep.subr.bf16.mxu0 0
    %619 = vmatpush1.bf16.msra.mxu0 %v597
    %620 = vmatprep.subr.bf16.mxu0 0
    %621 = vmatpush1.bf16.msra.mxu0 %v598
    %622 = vmatprep.subr.bf16.mxu0 0
    %623 = vmatpush1.bf16.msra.mxu0 %v599
    %624 = vmatprep.subr.bf16.mxu0 0
    %625 = vmatpush1.bf16.msra.mxu0 0
    %626 = vmatprep.subr.bf16.mxu0 0
    %627 = vmatpush1.bf16.msra.mxu0 0
    %628 = vmatprep.subr.bf16.mxu0 0
    %629 = vmatpush1.bf16.msra.mxu0 0
    %630 = vmatprep.subr.bf16.mxu0 0
    %631 = vmatpush1.bf16.msra.mxu0 0
    %632 = vmatprep.subr.bf16.mxu0 0
    %633 = vmatpush1.bf16.msra.mxu0 0
    %634 = vmatprep.subr.bf16.mxu0 0
    %635 = vmatpush1.bf16.msra.mxu0 0
    %636 = vmatprep.subr.bf16.mxu0 0
    %637 = vmatpush1.bf16.msra.mxu0 0
    %638 = vmatprep.subr.bf16.mxu0 0
    %639 = vmatpush1.bf16.msra.mxu0 0
    %640 = vmatprep.mubr.bf16.mxu0 0
    %641 = vmatmul.mubr.bf16.gmra.mrb[0].mxu0 %v528
    %v642 = vpop.f32.mrb[0].mxu0
    %v643 = vadd.f32 0.0, %v642
    %v644 = vpop.f32.mrb[0].mxu0
    %v645 = vpop.f32.mrb[0].mxu0
    %v646 = vadd.f32 0.0, %v645
    %v647 = vpop.f32.mrb[0].mxu0
    %648 = vmatprep.mubr.bf16.mxu0 0
    %649 = vmatmul.mubr.bf16.gmra.mrb[0].mxu0 %v529
    %v650 = vpop.f32.mrb[0].mxu0
    %v651 = vadd.f32 0.0, %v650
    %v652 = vpop.f32.mrb[0].mxu0
    %v653 = vpop.f32.mrb[0].mxu0
    %v654 = vadd.f32 0.0, %v653
    %v655 = vpop.f32.mrb[0].mxu0
    %656 = vmatprep.mubr.bf16.mxu0 0
    %657 = vmatmul.mubr.bf16.gmra.mrb[0].mxu0 %v530
    %v658 = vpop.f32.mrb[0].mxu0
    %v659 = vadd.f32 0.0, %v658
    %v660 = vpop.f32.mrb[0].mxu0
    %v661 = vpop.f32.mrb[0].mxu0
    %v662 = vadd.f32 0.0, %v661
    %v663 = vpop.f32.mrb[0].mxu0
    %664 = vmatprep.mubr.bf16.mxu0 0
    %665 = vmatmul.mubr.bf16.gmra.mrb[0].mxu0 %v531
    %v666 = vpop.f32.mrb[0].mxu0
    %v667 = vadd.f32 0.0, %v666
    %v668 = vpop.f32.mrb[0].mxu0
    %v669 = vpop.f32.mrb[0].mxu0
    %v670 = vadd.f32 0.0, %v669
    %v671 = vpop.f32.mrb[0].mxu0
    %672 = vmatprep.mubr.bf16.mxu0 0
    %673 = vmatmul.mubr.bf16.gmra.mrb[0].mxu0 %v532
    %v674 = vpop.f32.mrb[0].mxu0
    %v675 = vadd.f32 0.0, %v674
    %v676 = vpop.f32.mrb[0].mxu0
    %v677 = vpop.f32.mrb[0].mxu0
    %v678 = vadd.f32 0.0, %v677
    %v679 = vpop.f32.mrb[0].mxu0
    %680 = vmatprep.mubr.bf16.mxu0 0
    %681 = vmatmul.mubr.bf16.gmra.mrb[0].mxu0 %v533
    %v682 = vpop.f32.mrb[0].mxu0
    %v683 = vadd.f32 0.0, %v682
    %v684 = vpop.f32.mrb[0].mxu0
    %v685 = vpop.f32.mrb[0].mxu0
    %v686 = vadd.f32 0.0, %v685
    %v687 = vpop.f32.mrb[0].mxu0
    %688 = vmatprep.mubr.bf16.mxu0 0
    %689 = vmatmul.mubr.bf16.gmra.mrb[0].mxu0 %v534
    %v690 = vpop.f32.mrb[0].mxu0
    %v691 = vadd.f32 0.0, %v690
    %v692 = vpop.f32.mrb[0].mxu0
    %v693 = vpop.f32.mrb[0].mxu0
    %v694 = vadd.f32 0.0, %v693
    %v695 = vpop.f32.mrb[0].mxu0
    %696 = vmatprep.mubr.bf16.mxu0 0
    %697 = vmatmul.mubr.bf16.gmra.mrb[0].mxu0 %v535
    %v698 = vpop.f32.mrb[0].mxu0
    %v699 = vadd.f32 0.0, %v698
    %v700 = vpop.f32.mrb[0].mxu0
    %v701 = vpop.f32.mrb[0].mxu0
    %v702 = vadd.f32 0.0, %v701
    %v703 = vpop.f32.mrb[0].mxu0
    %704 = vmatprep.mubr.bf16.mxu0 0
    %705 = vmatmul.mubr.bf16.gmra.mrb[0].mxu0 %v536
    %v706 = vpop.f32.mrb[0].mxu0
    %v707 = vadd.f32 0.0, %v706
    %v708 = vpop.f32.mrb[0].mxu0
    %v709 = vpop.f32.mrb[0].mxu0
    %v710 = vadd.f32 0.0, %v709
    %v711 = vpop.f32.mrb[0].mxu0
    %712 = vmatprep.mubr.bf16.mxu0 0
    %713 = vmatmul.mubr.bf16.gmra.mrb[0].mxu0 %v537
    %v714 = vpop.f32.mrb[0].mxu0
    %v715 = vadd.f32 0.0, %v714
    %v716 = vpop.f32.mrb[0].mxu0
    %v717 = vpop.f32.mrb[0].mxu0
    %v718 = vadd.f32 0.0, %v717
    %v719 = vpop.f32.mrb[0].mxu0
    %720 = vmatprep.mubr.bf16.mxu0 0
    %721 = vmatmul.mubr.bf16.gmra.mrb[0].mxu0 %v538
    %v722 = vpop.f32.mrb[0].mxu0
    %v723 = vadd.f32 0.0, %v722
    %v724 = vpop.f32.mrb[0].mxu0
    %v725 = vpop.f32.mrb[0].mxu0
    %v726 = vadd.f32 0.0, %v725
    %v727 = vpop.f32.mrb[0].mxu0
    %728 = vmatprep.mubr.bf16.mxu0 0
    %729 = vmatmul.mubr.bf16.gmra.mrb[0].mxu0 %v539
    %v730 = vpop.f32.mrb[0].mxu0
    %v731 = vadd.f32 0.0, %v730
    %v732 = vpop.f32.mrb[0].mxu0
    %v733 = vpop.f32.mrb[0].mxu0
    %v734 = vadd.f32 0.0, %v733
    %v735 = vpop.f32.mrb[0].mxu0
    %736 = vmatprep.mubr.bf16.mxu0 0
    %737 = vmatmul.mubr.bf16.gmra.mrb[0].mxu0 %v540
    %v738 = vpop.f32.mrb[0].mxu0
    %v739 = vadd.f32 0.0, %v738
    %v740 = vpop.f32.mrb[0].mxu0
    %v741 = vpop.f32.mrb[0].mxu0
    %v742 = vadd.f32 0.0, %v741
    %v743 = vpop.f32.mrb[0].mxu0
    %744 = vmatprep.mubr.bf16.mxu0 0
    %745 = vmatmul.mubr.bf16.gmra.mrb[0].mxu0 %v541
    %v746 = vpop.f32.mrb[0].mxu0
    %v747 = vadd.f32 0.0, %v746
    %v748 = vpop.f32.mrb[0].mxu0
    %v749 = vpop.f32.mrb[0].mxu0
    %v750 = vadd.f32 0.0, %v749
    %v751 = vpop.f32.mrb[0].mxu0
    %752 = vmatprep.mubr.bf16.mxu0 0
    %753 = vmatmul.mubr.bf16.gmra.mrb[0].mxu0 %v542
    %v754 = vpop.f32.mrb[0].mxu0
    %v755 = vadd.f32 0.0, %v754
    %v756 = vpop.f32.mrb[0].mxu0
    %v757 = vpop.f32.mrb[0].mxu0
    %v758 = vadd.f32 0.0, %v757
    %v759 = vpop.f32.mrb[0].mxu0
    %760 = vmatprep.mubr.bf16.mxu0 0
    %761 = vmatmul.mubr.bf16.gmra.mrb[0].mxu0 %v543
    %v762 = vpop.f32.mrb[0].mxu0
    %v763 = vadd.f32 0.0, %v762
    %v764 = vpop.f32.mrb[0].mxu0
    %v765 = vpop.f32.mrb[0].mxu0
    %v766 = vadd.f32 0.0, %v765
    %v767 = vpop.f32.mrb[0].mxu0
    %768 = vdwg.mxu0
    %v769 = vadd.f32 %v643, %v646
    %v770 = vadd.f32 %v769, %v651
    %v771 = vadd.f32 %v770, %v654
    %v772 = vadd.f32 %v771, %v659
    %v773 = vadd.f32 %v772, %v662
    %v774 = vadd.f32 %v773, %v667
    %v775 = vadd.f32 %v774, %v670
    %v776 = vadd.f32 %v775, %v675
    %v777 = vadd.f32 %v776, %v678
    %v778 = vadd.f32 %v777, %v683
    %v779 = vadd.f32 %v778, %v686
    %v780 = vadd.f32 %v779, %v691
    %v781 = vadd.f32 %v780, %v694
    %v782 = vadd.f32 %v781, %v699
    %v783 = vadd.f32 %v782, %v702
    %v784 = vadd.f32 %v783, %v707
    %v785 = vadd.f32 %v784, %v710
    %v786 = vadd.f32 %v785, %v715
    %v787 = vadd.f32 %v786, %v718
    %v788 = vadd.f32 %v787, %v723
    %v789 = vadd.f32 %v788, %v726
    %v790 = vadd.f32 %v789, %v731
    %v791 = vadd.f32 %v790, %v734
    %v792 = vadd.f32 %v791, %v739
    %v793 = vadd.f32 %v792, %v742
    %v794 = vadd.f32 %v793, %v747
    %v795 = vadd.f32 %v794, %v750
    %v796 = vadd.f32 %v795, %v755
    %v797 = vadd.f32 %v796, %v758
    %v798 = vadd.f32 %v797, %v763
    %v799 = vadd.f32 %v798, %v766
    %v800 = vrot.slane %v799, 4
    %v801 = vadd.f32 %v799, %v800
    %v802 = vrot.slane %v801, 2
    %v803 = vadd.f32 %v801, %v802
    %v804 = vrot.slane %v803, 1
    %v805 = vadd.f32 %v803, %v804
    %v806 = vmul.f32 %v805, 0.00390625
    %v807 = vmul.f32 %v643, %v643
    %v808 = vmul.f32 %v646, %v646
    %v809 = vmul.f32 %v651, %v651
    %v810 = vmul.f32 %v654, %v654
    %v811 = vmul.f32 %v659, %v659
    %v812 = vmul.f32 %v662, %v662
    %v813 = vmul.f32 %v667, %v667
    %v814 = vmul.f32 %v670, %v670
    %v815 = vmul.f32 %v675, %v675
    %v816 = vmul.f32 %v678, %v678
    %v817 = vmul.f32 %v683, %v683
    %v818 = vmul.f32 %v686, %v686
    %v819 = vmul.f32 %v691, %v691
    %v820 = vmul.f32 %v694, %v694
    %v821 = vmul.f32 %v699, %v699
    %v822 = vmul.f32 %v702, %v702
    %v823 = vmul.f32 %v707, %v707
    %v824 = vmul.f32 %v710, %v710
    %v825 = vmul.f32 %v715, %v715
    %v826 = vmul.f32 %v718, %v718
    %v827 = vmul.f32 %v723, %v723
    %v828 = vmul.f32 %v726, %v726
    %v829 = vmul.f32 %v731, %v731
    %v830 = vmul.f32 %v734, %v734
    %v831 = vmul.f32 %v739, %v739
    %v832 = vmul.f32 %v742, %v742
    %v833 = vmul.f32 %v747, %v747
    %v834 = vmul.f32 %v750, %v750
    %v835 = vmul.f32 %v755, %v755
    %v836 = vmul.f32 %v758, %v758
    %v837 = vmul.f32 %v763, %v763
    %v838 = vmul.f32 %v766, %v766
    %v839 = vadd.f32 %v807, %v808
    %v840 = vadd.f32 %v839, %v809
    %v841 = vadd.f32 %v840, %v810
    %v842 = vadd.f32 %v841, %v811
    %v843 = vadd.f32 %v842, %v812
    %v844 = vadd.f32 %v843, %v813
    %v845 = vadd.f32 %v844, %v814
    %v846 = vadd.f32 %v845, %v815
    %v847 = vadd.f32 %v846, %v816
    %v848 = vadd.f32 %v847, %v817
    %v849 = vadd.f32 %v848, %v818
    %v850 = vadd.f32 %v849, %v819
    %v851 = vadd.f32 %v850, %v820
    %v852 = vadd.f32 %v851, %v821
    %v853 = vadd.f32 %v852, %v822
    %v854 = vadd.f32 %v853, %v823
    %v855 = vadd.f32 %v854, %v824
    %v856 = vadd.f32 %v855, %v825
    %v857 = vadd.f32 %v856, %v826
    %v858 = vadd.f32 %v857, %v827
    %v859 = vadd.f32 %v858, %v828
    %v860 = vadd.f32 %v859, %v829
    %v861 = vadd.f32 %v860, %v830
    %v862 = vadd.f32 %v861, %v831
    %v863 = vadd.f32 %v862, %v832
    %v864 = vadd.f32 %v863, %v833
    %v865 = vadd.f32 %v864, %v834
    %v866 = vadd.f32 %v865, %v835
    %v867 = vadd.f32 %v866, %v836
    %v868 = vadd.f32 %v867, %v837
    %v869 = vadd.f32 %v868, %v838
    %v870 = vrot.slane %v869, 4
    %v871 = vadd.f32 %v869, %v870
    %v872 = vrot.slane %v871, 2
    %v873 = vadd.f32 %v871, %v872
    %v874 = vrot.slane %v873, 1
    %v875 = vadd.f32 %v873, %v874
    %v876 = vmul.f32 %v875, 0.00390625
    %v877 = vmul.f32 %v806, %v806
    %v878 = vsub.f32 %v876, %v877
    %v879 = vmax.f32 %v878, 0.0
    %v880 = vld [vmem:[%s5] sm:$0x1]
    %v881 = vadd.f32 %v879, 1e-05
    %v882 = vrsqrt.pop %v881
    %v883 = vmul.f32 %v880, %v882
    %v884 = vld [vmem:[%s6] sm:$0x1]
    %v885 = vmul.f32 %v806, %v883
    %v886 = vsub.f32 %v884, %v885
    %v888 = vlaneseq
    %v889 = vshrl.u32 %v888, 7
    %v890 = vsub.s32 0, %v889
    %v891 = vrot.slane %v883, %v890
    %v893 = vmul.f32 %v643, %v891
    %v894 = vmul.f32 %v646, %v891
    %v895 = vmul.f32 %v651, %v891
    %v896 = vmul.f32 %v654, %v891
    %v897 = vmul.f32 %v659, %v891
    %v898 = vmul.f32 %v662, %v891
    %v899 = vmul.f32 %v667, %v891
    %v900 = vmul.f32 %v670, %v891
    %v901 = vmul.f32 %v675, %v891
    %v902 = vmul.f32 %v678, %v891
    %v903 = vmul.f32 %v683, %v891
    %v904 = vmul.f32 %v686, %v891
    %v905 = vmul.f32 %v691, %v891
    %v906 = vmul.f32 %v694, %v891
    %v907 = vmul.f32 %v699, %v891
    %v908 = vmul.f32 %v702, %v891
    %v909 = vmul.f32 %v707, %v891
    %v910 = vmul.f32 %v710, %v891
    %v911 = vmul.f32 %v715, %v891
    %v912 = vmul.f32 %v718, %v891
    %v913 = vmul.f32 %v723, %v891
    %v914 = vmul.f32 %v726, %v891
    %v915 = vmul.f32 %v731, %v891
    %v916 = vmul.f32 %v734, %v891
    %v917 = vmul.f32 %v739, %v891
    %v918 = vmul.f32 %v742, %v891
    %v919 = vmul.f32 %v747, %v891
    %v920 = vmul.f32 %v750, %v891
    %v921 = vmul.f32 %v755, %v891
    %v922 = vmul.f32 %v758, %v891
    %v923 = vmul.f32 %v763, %v891
    %v924 = vmul.f32 %v766, %v891
    %v926 = vlaneseq
    %v927 = vshrl.u32 %v926, 7
    %v928 = vsub.s32 0, %v927
    %v929 = vrot.slane %v886, %v928
    %v931 = vadd.f32 %v893, %v929
    %v932 = vadd.f32 %v894, %v929
    %v933 = vadd.f32 %v895, %v929
    %v934 = vadd.f32 %v896, %v929
    %v935 = vadd.f32 %v897, %v929
    %v936 = vadd.f32 %v898, %v929
    %v937 = vadd.f32 %v899, %v929
    %v938 = vadd.f32 %v900, %v929
    %v939 = vadd.f32 %v901, %v929
    %v940 = vadd.f32 %v902, %v929
    %v941 = vadd.f32 %v903, %v929
    %v942 = vadd.f32 %v904, %v929
    %v943 = vadd.f32 %v905, %v929
    %v944 = vadd.f32 %v906, %v929
    %v945 = vadd.f32 %v907, %v929
    %v946 = vadd.f32 %v908, %v929
    %v947 = vadd.f32 %v909, %v929
    %v948 = vadd.f32 %v910, %v929
    %v949 = vadd.f32 %v911, %v929
    %v950 = vadd.f32 %v912, %v929
    %v951 = vadd.f32 %v913, %v929
    %v952 = vadd.f32 %v914, %v929
    %v953 = vadd.f32 %v915, %v929
    %v954 = vadd.f32 %v916, %v929
    %v955 = vadd.f32 %v917, %v929
    %v956 = vadd.f32 %v918, %v929
    %v957 = vadd.f32 %v919, %v929
    %v958 = vadd.f32 %v920, %v929
    %v959 = vadd.f32 %v921, %v929
    %v960 = vadd.f32 %v922, %v929
    %v961 = vadd.f32 %v923, %v929
    %v962 = vadd.f32 %v924, %v929
    %v963 = vmax.f32 %v931, 0.0
    %v964 = vmax.f32 %v932, 0.0
    %v965 = vmax.f32 %v933, 0.0
    %v966 = vmax.f32 %v934, 0.0
    %v967 = vmax.f32 %v935, 0.0
    %v968 = vmax.f32 %v936, 0.0
    %v969 = vmax.f32 %v937, 0.0
    %v970 = vmax.f32 %v938, 0.0
    %v971 = vmax.f32 %v939, 0.0
    %v972 = vmax.f32 %v940, 0.0
    %v973 = vmax.f32 %v941, 0.0
    %v974 = vmax.f32 %v942, 0.0
    %v975 = vmax.f32 %v943, 0.0
    %v976 = vmax.f32 %v944, 0.0
    %v977 = vmax.f32 %v945, 0.0
    %v978 = vmax.f32 %v946, 0.0
    %v979 = vmax.f32 %v947, 0.0
    %v980 = vmax.f32 %v948, 0.0
    %v981 = vmax.f32 %v949, 0.0
    %v982 = vmax.f32 %v950, 0.0
    %v983 = vmax.f32 %v951, 0.0
    %v984 = vmax.f32 %v952, 0.0
    %v985 = vmax.f32 %v953, 0.0
    %v986 = vmax.f32 %v954, 0.0
    %v987 = vmax.f32 %v955, 0.0
    %v988 = vmax.f32 %v956, 0.0
    %v989 = vmax.f32 %v957, 0.0
    %v990 = vmax.f32 %v958, 0.0
    %v991 = vmax.f32 %v959, 0.0
    %v992 = vmax.f32 %v960, 0.0
    %v993 = vmax.f32 %v961, 0.0
    %v994 = vmax.f32 %v962, 0.0
    %v995 = vmax.f32 %v963, %v964
    %v996 = vrot.slane %v995, 4
    %v997 = vmax.f32 %v995, %v996
    %v998 = vrot.slane %v997, 2
    %v999 = vmax.f32 %v997, %v998
    %v1000 = vrot.slane %v999, 1
    %v1001 = vmax.f32 %v999, %v1000
    %v1002 = vmax.f32 %v965, %v966
    %v1003 = vrot.slane %v1002, 4
    %v1004 = vmax.f32 %v1002, %v1003
    %v1005 = vrot.slane %v1004, 2
    %v1006 = vmax.f32 %v1004, %v1005
    %v1007 = vrot.slane %v1006, 1
    %v1008 = vmax.f32 %v1006, %v1007
    %v1009 = vmax.f32 %v967, %v968
    %v1010 = vrot.slane %v1009, 4
    %v1011 = vmax.f32 %v1009, %v1010
    %v1012 = vrot.slane %v1011, 2
    %v1013 = vmax.f32 %v1011, %v1012
    %v1014 = vrot.slane %v1013, 1
    %v1015 = vmax.f32 %v1013, %v1014
    %v1016 = vmax.f32 %v969, %v970
    %v1017 = vrot.slane %v1016, 4
    %v1018 = vmax.f32 %v1016, %v1017
    %v1019 = vrot.slane %v1018, 2
    %v1020 = vmax.f32 %v1018, %v1019
    %v1021 = vrot.slane %v1020, 1
    %v1022 = vmax.f32 %v1020, %v1021
    %v1023 = vmax.f32 %v971, %v972
    %v1024 = vrot.slane %v1023, 4
    %v1025 = vmax.f32 %v1023, %v1024
    %v1026 = vrot.slane %v1025, 2
    %v1027 = vmax.f32 %v1025, %v1026
    %v1028 = vrot.slane %v1027, 1
    %v1029 = vmax.f32 %v1027, %v1028
    %v1030 = vmax.f32 %v973, %v974
    %v1031 = vrot.slane %v1030, 4
    %v1032 = vmax.f32 %v1030, %v1031
    %v1033 = vrot.slane %v1032, 2
    %v1034 = vmax.f32 %v1032, %v1033
    %v1035 = vrot.slane %v1034, 1
    %v1036 = vmax.f32 %v1034, %v1035
    %v1037 = vmax.f32 %v975, %v976
    %v1038 = vrot.slane %v1037, 4
    %v1039 = vmax.f32 %v1037, %v1038
    %v1040 = vrot.slane %v1039, 2
    %v1041 = vmax.f32 %v1039, %v1040
    %v1042 = vrot.slane %v1041, 1
    %v1043 = vmax.f32 %v1041, %v1042
    %v1044 = vmax.f32 %v977, %v978
    %v1045 = vrot.slane %v1044, 4
    %v1046 = vmax.f32 %v1044, %v1045
    %v1047 = vrot.slane %v1046, 2
    %v1048 = vmax.f32 %v1046, %v1047
    %v1049 = vrot.slane %v1048, 1
    %v1050 = vmax.f32 %v1048, %v1049
    %v1051 = vmax.f32 %v979, %v980
    %v1052 = vrot.slane %v1051, 4
    %v1053 = vmax.f32 %v1051, %v1052
    %v1054 = vrot.slane %v1053, 2
    %v1055 = vmax.f32 %v1053, %v1054
    %v1056 = vrot.slane %v1055, 1
    %v1057 = vmax.f32 %v1055, %v1056
    %v1058 = vmax.f32 %v981, %v982
    %v1059 = vrot.slane %v1058, 4
    %v1060 = vmax.f32 %v1058, %v1059
    %v1061 = vrot.slane %v1060, 2
    %v1062 = vmax.f32 %v1060, %v1061
    %v1063 = vrot.slane %v1062, 1
    %v1064 = vmax.f32 %v1062, %v1063
    %v1065 = vmax.f32 %v983, %v984
    %v1066 = vrot.slane %v1065, 4
    %v1067 = vmax.f32 %v1065, %v1066
    %v1068 = vrot.slane %v1067, 2
    %v1069 = vmax.f32 %v1067, %v1068
    %v1070 = vrot.slane %v1069, 1
    %v1071 = vmax.f32 %v1069, %v1070
    %v1072 = vmax.f32 %v985, %v986
    %v1073 = vrot.slane %v1072, 4
    %v1074 = vmax.f32 %v1072, %v1073
    %v1075 = vrot.slane %v1074, 2
    %v1076 = vmax.f32 %v1074, %v1075
    %v1077 = vrot.slane %v1076, 1
    %v1078 = vmax.f32 %v1076, %v1077
    %v1079 = vmax.f32 %v987, %v988
    %v1080 = vrot.slane %v1079, 4
    %v1081 = vmax.f32 %v1079, %v1080
    %v1082 = vrot.slane %v1081, 2
    %v1083 = vmax.f32 %v1081, %v1082
    %v1084 = vrot.slane %v1083, 1
    %v1085 = vmax.f32 %v1083, %v1084
    %v1086 = vmax.f32 %v989, %v990
    %v1087 = vrot.slane %v1086, 4
    %v1088 = vmax.f32 %v1086, %v1087
    %v1089 = vrot.slane %v1088, 2
    %v1090 = vmax.f32 %v1088, %v1089
    %v1091 = vrot.slane %v1090, 1
    %v1092 = vmax.f32 %v1090, %v1091
    %v1093 = vmax.f32 %v991, %v992
    %v1094 = vrot.slane %v1093, 4
    %v1095 = vmax.f32 %v1093, %v1094
    %v1096 = vrot.slane %v1095, 2
    %v1097 = vmax.f32 %v1095, %v1096
    %v1098 = vrot.slane %v1097, 1
    %v1099 = vmax.f32 %v1097, %v1098
    %v1100 = vmax.f32 %v993, %v994
    %v1101 = vrot.slane %v1100, 4
    %v1102 = vmax.f32 %v1100, %v1101
    %v1103 = vrot.slane %v1102, 2
    %v1104 = vmax.f32 %v1102, %v1103
    %v1105 = vrot.slane %v1104, 1
    %v1106 = vmax.f32 %v1104, %v1105
    %vm1123 = vcmask 1041409
    %v1124 = vsel %vm1123, %v1008, %v1001
    %vm1125 = vcmask 1042434
    %v1126 = vsel %vm1125, %v1015, %v1124
    %vm1127 = vcmask 1043459
    %v1128 = vsel %vm1127, %v1022, %v1126
    %vm1129 = vcmask 1044484
    %v1130 = vsel %vm1129, %v1029, %v1128
    %vm1131 = vcmask 1045509
    %v1132 = vsel %vm1131, %v1036, %v1130
    %vm1133 = vcmask 1046534
    %v1134 = vsel %vm1133, %v1043, %v1132
    %vm1135 = vcmask 1047559
    %v1136 = vsel %vm1135, %v1050, %v1134
    %v1137 = vsel %vm1123, %v1064, %v1057
    %v1138 = vsel %vm1125, %v1071, %v1137
    %v1139 = vsel %vm1127, %v1078, %v1138
    %v1140 = vsel %vm1129, %v1085, %v1139
    %v1141 = vsel %vm1131, %v1092, %v1140
    %v1142 = vsel %vm1133, %v1099, %v1141
    %v1143 = vsel %vm1135, %v1106, %v1142
    %1146 = vst [vmem:[#allocation2] sm:$0xff] %v1136
    %1147 = vst [vmem:[#allocation2 + $0x8] sm:$0xff] %v1143
    // Predicated region
    $region30: #{tpu_custom_call.1} parent=1 // pred_check
      _
    $region31: #{tpu_custom_call.1} parent=1 // pred_check_branch
      %1149 = sbr.rel (0) target = $region33
    $region32: #{tpu_custom_call.1} parent=1 // pred_region
      %s1151 = ssub.s32 256, 256
      %1152 = vsyncadd [#allocation3], %s1151
      %s1153 = sshll.u32 [#allocation2], 4
      %s1154 = int_to_ptr.vmem [resolvable:$true] %s1153
      %1159 = dma.vmem_to_hbm [thread:$0]  %s1154, 256, %s7, [#allocation3], 128, 128, 8
    $region33: #{tpu_custom_call.1} parent=1 // pred_fallthru
      _
    // Predicated region
    $region34: #{tpu_custom_call.1} parent=1 // pred_check
      _
    $region35: #{tpu_custom_call.1} parent=1 // pred_check_branch
      %1161 = sbr.rel (0) target = $region37
    $region36: #{tpu_custom_call.1} parent=1 // pred_region
      %1162 = dma.done [#allocation3], 256
    $region37: #{tpu_custom_call.1} parent=1 // pred_fallthru
      _
    %1163 = vsyncpa [#allocation3], 1

</llo_original>
